<compile_context>
chip_gen: v7x
topology: tpu7x:2x2x1
jax: 0.10.0
libtpu: 0.0.40
codegen_flags: <defaults>
</compile_context>

<pallas_src>
import math

import jax
import jax.numpy as jnp
from jax import lax
from jax.experimental import pallas as pl
from jax.experimental.pallas import tpu as pltpu


def _similarity_adj_kernel(seq_len_ref, theta_q_ref, theta_k_ref, o_ref):
    # seq_len_ref : SMEM int32[B]              (scalar-prefetch)
    # theta_q_ref : VMEM (1, TQ, Dout) bf16    row-normalized theta (query rows)
    # theta_k_ref : VMEM (1, T,  Dout) bf16    row-normalized theta (all rows)
    # o_ref       : VMEM (1, TQ, T)   f32      current query-row tile of output
    b = pl.program_id(0)
    q = pl.program_id(1)
    L = seq_len_ref[b]

    _, TQ, T = o_ref.shape
    row0 = q * TQ

    # ---- fully masked row tile: no matmul / exp / softmax work ----
    @pl.when(row0 >= L)
    def _():
        o_ref[0] = jnp.zeros((TQ, T), dtype=o_ref.dtype)

    # ---- active row tile ----
    @pl.when(row0 < L)
    def _():
        lhs = theta_q_ref[0]                       # (TQ, Dout) bf16, unit rows
        rhs = theta_k_ref[0]                       # (T,  Dout) bf16, unit rows
        # cosine similarity directly (rows are unit-normalized); contract dim 1
        # of both operands -> no transpose materialized.
        cos = lax.dot_general(lhs, rhs, (((1,), (1,)), ((), ())),
                              preferred_element_type=jnp.float32)   # (TQ, T)

        # F.threshold(x, 0.7, 0): keep x where x > 0.7 else 0
        thr = jnp.where(cos > jnp.float32(0.7), cos, jnp.float32(0.0))

        # small-iota masks; broadcast happens inside the where's
        row_valid = (row0 + lax.broadcasted_iota(jnp.int32, (TQ, 1), 0)) < L
        col_valid = lax.broadcasted_iota(jnp.int32, (1, T), 1) < L

        # thr is bounded in [0, ~1] -> no max-subtraction needed before exp.
        e = jnp.where(col_valid, jnp.exp(thr), jnp.float32(0.0))    # (TQ, T)
        s = jnp.sum(e, axis=-1, keepdims=True)                      # (TQ, 1)
        sm = e * pl.reciprocal(s, approx=True)

        # columns >= L are already exactly zero via `e`; only mask padded rows.
        o_ref[0] = jnp.where(row_valid, sm, jnp.float32(0.0)).astype(o_ref.dtype)


def _round_up(n, m):
    return ((n + m - 1) // m) * m


def _vmem_ceiling_bytes():
    # Generation-aware ceiling: leave 1/4 of physical VMEM for Mosaic internal
    # scratch and pipeline bookkeeping (~48 MiB on v7x, ~96 MiB on v5e/v6e).
    cap = 128 << 20
    try:
        info = pltpu.get_tpu_info()
        cap = int(getattr(info, "vmem_capacity_bytes", cap))
    except Exception:
        pass
    return max((cap * 3) // 4, 24 << 20)


def _tile_estimate_bytes(tq, t_pad, dout):
    return (2 * tq * dout * 2          # lhs double-buffer (bf16)
            + 2 * t_pad * dout * 2     # rhs double-buffer (bf16)
            + 2 * tq * t_pad * 4       # out double-buffer (f32)
            + 6 * tq * t_pad * 4)      # in-kernel (TQ, T) f32 temporaries


def _pick_tiling(T, Dout, vmem_ceiling):
    t8 = _round_up(T, 8)
    for tq in (512, 256, 128, 64, 32, 16, 8):
        if tq > t8:
            continue
        t_pad = _round_up(T, tq)
        est = int(1.25 * _tile_estimate_bytes(tq, t_pad, Dout)) + (4 << 20)
        if est <= vmem_ceiling:
            return tq, t_pad, est
    tq = 8
    t_pad = _round_up(T, 8)
    est = int(1.25 * _tile_estimate_bytes(tq, t_pad, Dout)) + (4 << 20)
    return tq, t_pad, est


def similarity_adj(x, weight0, seq_len=None):
    """x: (B, T, Din); weight0: (Din, Dout); seq_len: None or int array (B,).

    Returns float32 (B, T, T) regardless of x's dtype (matmul precision is
    bf16-in / f32-accumulate, matching the reference below).
    """
    B, T, Din = x.shape
    Dout = weight0.shape[1]
    if seq_len is None:
        seq_len_arr = jnp.full((B,), T, dtype=jnp.int32)
    else:
        seq_len_arr = jnp.asarray(seq_len, dtype=jnp.int32)

    # ---- hoisted projection: one big (B*T, Din) x (Din, Dout) bf16 matmul ----
    theta = jnp.einsum("btd,de->bte",
                       x.astype(jnp.bfloat16), weight0.astype(jnp.bfloat16),
                       preferred_element_type=jnp.float32)              # (B,T,Dout) f32
    inv_norm = lax.rsqrt(jnp.sum(theta * theta, axis=-1, keepdims=True)
                         + jnp.float32(1e-20))
    theta_n = (theta * inv_norm).astype(jnp.bfloat16)                   # unit rows, bf16

    # ---- tiling / padding ----
    vmem_ceiling = _vmem_ceiling_bytes()
    TQ, T_pad, est = _pick_tiling(T, Dout, vmem_ceiling)
    if T_pad != T:
        theta_n = jnp.pad(theta_n, ((0, 0), (0, T_pad - T), (0, 0)))
    nq = T_pad // TQ

    vmem_bytes = min(max(est, 16 << 20), vmem_ceiling)

    out = pl.pallas_call(
        _similarity_adj_kernel,
        out_shape=jax.ShapeDtypeStruct((B, T_pad, T_pad), jnp.float32),
        grid_spec=pltpu.PrefetchScalarGridSpec(
            num_scalar_prefetch=1,
            grid=(B, nq),
            in_specs=[
                # query rows of normalized theta (varies with q)
                pl.BlockSpec((1, TQ, Dout), lambda b, q, sl: (b, q, 0)),
                # full-sequence normalized theta (constant across q)
                pl.BlockSpec((1, T_pad, Dout), lambda b, q, sl: (b, 0, 0)),
            ],
            out_specs=pl.BlockSpec((1, TQ, T_pad), lambda b, q, sl: (b, q, 0)),
        ),
        compiler_params=pltpu.CompilerParams(
            dimension_semantics=("parallel", "parallel"),
            vmem_limit_bytes=vmem_bytes,
        ),
    )(seq_len_arr, theta_n, theta_n)

    if T_pad != T:
        out = out[:, :T, :T]
    return out


def _xavier_uniform(key, shape):
    fan_in, fan_out = shape
    bound = math.sqrt(6.0 / (fan_in + fan_out))
    return jax.random.uniform(key, shape, jnp.float32, -bound, bound)


def _reference(x, w0, seq_len):
    # Pure-JAX mirror of the PyTorch forward, evaluated at the kernel's matmul
    # precision (bf16 inputs, f32 accumulation, normalized rows) so the 0.7
    # threshold decision is taken on the same values as in the kernel.
    theta = jnp.einsum("btd,de->bte", x.astype(jnp.bfloat16),
                       w0.astype(jnp.bfloat16),
                       preferred_element_type=jnp.float32)
    inv = lax.rsqrt(jnp.sum(theta * theta, axis=-1, keepdims=True) + 1e-20)
    tn = (theta * inv).astype(jnp.bfloat16)
    cos = jnp.einsum("bte,bse->bts", tn, tn,
                     preferred_element_type=jnp.float32)
    thr = jnp.where(cos > 0.7, cos, 0.0)
    B, T, _ = thr.shape
    out = jnp.zeros_like(thr)
    for b in range(B):
        L = int(seq_len[b])
        blk = thr[b, :L, :L]
        sm = jax.nn.softmax(blk, axis=1)
        out = out.at[b, :L, :L].set(sm)
    return out


if __name__ == "__main__":
    key = jax.random.PRNGKey(0)
    k_x, k_w0, k_w1 = jax.random.split(key, 3)

    B, T = 2, 8
    in_features, out_features = 32, 32

    x = jax.random.normal(k_x, (B, T, in_features), jnp.float32)
    weight0 = _xavier_uniform(k_w0, (in_features, out_features))
    weight1 = _xavier_uniform(k_w1, (in_features, out_features))  # unused in forward (module parity)

    seq_len = jnp.array([T, T - 3], dtype=jnp.int32)

    # seq_len path
    out = jax.block_until_ready(similarity_adj(x, weight0, seq_len))
    ref = _reference(x, weight0, seq_len)
    assert out.shape == (B, T, T)
    assert jnp.allclose(out, ref, atol=3e-3, rtol=3e-3), "mismatch vs reference (seq_len path)"

    # seq_len=None path (equivalent to full-length sequences)
    out_full = jax.block_until_ready(similarity_adj(x, weight0, None))
    ref_full = _reference(x, weight0, jnp.array([T, T], dtype=jnp.int32))
    assert jnp.allclose(out_full, ref_full, atol=3e-3, rtol=3e-3), "mismatch vs reference (None path)"

    print("KERNEL_OK")
</pallas_src>

<mosaic_0001>
module attributes {stable_mosaic.version = 11 : i64} {
  func.func @_similarity_adj_kernel(%arg0: i32, %arg1: i32, %arg2: memref<2xi32, #tpu.memory_space<smem>>, %arg3: memref<1x8x32xbf16, #tpu.memory_space<vmem>>, %arg4: memref<1x8x32xbf16, #tpu.memory_space<vmem>>, %arg5: memref<1x8x8xf32, #tpu.memory_space<vmem>>) attributes {dimension_semantics = [#tpu.dimension_semantics<parallel>, #tpu.dimension_semantics<parallel>], iteration_bounds = array<i64: 2, 1>, scalar_prefetch = 1 : i64, scratch_operands = 0 : i64, tpu.core_type = #tpu.core_type<tc>, window_params = [{transform_indices = @transform_0, window_bounds = array<i64: 1, 8, 32>}, {transform_indices = @transform_1, window_bounds = array<i64: 1, 8, 32>}, {transform_indices = @transform_2, window_bounds = array<i64: 1, 8, 8>}]} {
    %0 = arith.index_cast %arg0 : i32 to index
    %1 = memref.load %arg2[%0] : memref<2xi32, #tpu.memory_space<smem>>
    %c8_i32 = arith.constant 8 : i32
    %2 = arith.muli %arg1, %c8_i32 : i32
    %3 = arith.cmpi sge, %2, %1 : i32
    %4 = arith.extui %3 : i1 to i32
    %c0_i32 = arith.constant 0 : i32
    %5 = arith.cmpi ne, %4, %c0_i32 : i32
    scf.if %5 {
      %cst = arith.constant 0.000000e+00 : f32
      %9 = vector.broadcast %cst : f32 to vector<8x8xf32>
      %c0 = arith.constant 0 : index
      %c0_1 = arith.constant 0 : index
      %c0_2 = arith.constant 0 : index
      %10 = vector.load %arg5[%c0, %c0_1, %c0_2] : memref<1x8x8xf32, #tpu.memory_space<vmem>>, vector<1x8x8xf32>
      %11 = vector.shape_cast %10 : vector<1x8x8xf32> to vector<8x8xf32>
      %12 = vector.shape_cast %9 : vector<8x8xf32> to vector<1x8x8xf32>
      tpu.vector_store %arg5[%c0, %c0_1, %c0_2], %12 {strides = array<i32>} : memref<1x8x8xf32, #tpu.memory_space<vmem>>, vector<1x8x8xf32>,
    } else {
    }
    %6 = arith.cmpi slt, %2, %1 : i32
    %7 = arith.extui %6 : i1 to i32
    %c0_i32_0 = arith.constant 0 : i32
    %8 = arith.cmpi ne, %7, %c0_i32_0 : i32
    scf.if %8 {
      %c0 = arith.constant 0 : index
      %c0_1 = arith.constant 0 : index
      %c0_2 = arith.constant 0 : index
      %9 = vector.load %arg3[%c0, %c0_1, %c0_2] : memref<1x8x32xbf16, #tpu.memory_space<vmem>>, vector<1x8x32xbf16>
      %10 = vector.shape_cast %9 : vector<1x8x32xbf16> to vector<8x32xbf16>
      %c0_3 = arith.constant 0 : index
      %c0_4 = arith.constant 0 : index
      %c0_5 = arith.constant 0 : index
      %11 = vector.load %arg4[%c0_3, %c0_4, %c0_5] : memref<1x8x32xbf16, #tpu.memory_space<vmem>>, vector<1x8x32xbf16>
      %12 = vector.shape_cast %11 : vector<1x8x32xbf16> to vector<8x32xbf16>
      %cst = arith.constant dense<0.000000e+00> : vector<8x8xf32>
      %13 = tpu.matmul %10, %12, %cst {dimension_numbers = #tpu.dot_dimension_numbers<[1], [1], [0], [0], [0, 0, 1, 0], [], []>} : vector<8x32xbf16>, vector<8x32xbf16>, vector<8x8xf32> -> vector<8x8xf32>
      %cst_6 = arith.constant 0.699999988 : f32
      %14 = vector.broadcast %cst_6 : f32 to vector<8x8xf32>
      %15 = arith.cmpf ogt, %13, %14 : vector<8x8xf32>
      %cst_7 = arith.constant 0.000000e+00 : f32
      %16 = vector.broadcast %cst_7 : f32 to vector<8x8xf32>
      %17 = arith.select %15, %13, %16 : vector<8x8xi1>, vector<8x8xf32>
      %18 = tpu.iota {dimensions = array<i32: 0>} : vector<8x1xi32>
      %19 = vector.broadcast %2 : i32 to vector<8x1xi32>
      %20 = arith.addi %19, %18 : vector<8x1xi32>
      %21 = vector.broadcast %1 : i32 to vector<8x1xi32>
      %22 = arith.cmpi slt, %20, %21 : vector<8x1xi32>
      %23 = tpu.iota {dimensions = array<i32: 1>} : vector<1x8xi32>
      %24 = vector.broadcast %1 : i32 to vector<1x8xi32>
      %25 = arith.cmpi slt, %23, %24 : vector<1x8xi32>
      %26 = math.exp %17 : vector<8x8xf32>
      %cst_8 = arith.constant 0.000000e+00 : f32
      %27 = vector.shape_cast %25 : vector<1x8xi1> to vector<1x8xi1>
      %28 = vector.broadcast %27 : vector<1x8xi1> to vector<8x8xi1>
      %29 = vector.broadcast %cst_8 : f32 to vector<8x8xf32>
      %30 = arith.select %28, %26, %29 : vector<8x8xi1>, vector<8x8xf32>
      %cst_9 = arith.constant dense<0.000000e+00> : vector<8xf32>
      %31 = vector.multi_reduction <add>, %30, %cst_9 [1] : vector<8x8xf32> to vector<8xf32>
      %32 = vector.shape_cast %31 : vector<8xf32> to vector<8x1xf32>
      %33 = tpu.reciprocal %32 {approx = true} : vector<8x1xf32> -> vector<8x1xf32>
      %34 = vector.broadcast %33 : vector<8x1xf32> to vector<8x8xf32>
      %35 = arith.mulf %30, %34 : vector<8x8xf32>
      %cst_10 = arith.constant 0.000000e+00 : f32
      %36 = vector.shape_cast %22 : vector<8x1xi1> to vector<8x1xi1>
      %37 = vector.broadcast %36 : vector<8x1xi1> to vector<8x8xi1>
      %38 = vector.broadcast %cst_10 : f32 to vector<8x8xf32>
      %39 = arith.select %37, %35, %38 : vector<8x8xi1>, vector<8x8xf32>
      %c0_11 = arith.constant 0 : index
      %c0_12 = arith.constant 0 : index
      %c0_13 = arith.constant 0 : index
      %40 = vector.load %arg5[%c0_11, %c0_12, %c0_13] : memref<1x8x8xf32, #tpu.memory_space<vmem>>, vector<1x8x8xf32>
      %41 = vector.shape_cast %40 : vector<1x8x8xf32> to vector<8x8xf32>
      %42 = vector.shape_cast %39 : vector<8x8xf32> to vector<1x8x8xf32>
      tpu.vector_store %arg5[%c0_11, %c0_12, %c0_13], %42 {strides = array<i32>} : memref<1x8x8xf32, #tpu.memory_space<vmem>>, vector<1x8x8xf32>,
    } else {
    }
    return
  }
  func.func @transform_0(%arg0: i32, %arg1: i32, %arg2: memref<2xi32, #tpu.memory_space<smem>>) -> (i32, i32, i32) {
    %c0_i32 = arith.constant 0 : i32
    %c0_i32_0 = arith.constant 0 : i32
    return %arg0, %arg1, %c0_i32 : i32, i32, i32
  }
  func.func @transform_1(%arg0: i32, %arg1: i32, %arg2: memref<2xi32, #tpu.memory_space<smem>>) -> (i32, i32, i32) {
    %c0_i32 = arith.constant 0 : i32
    %c0_i32_0 = arith.constant 0 : i32
    %c0_i32_1 = arith.constant 0 : i32
    return %arg0, %c0_i32, %c0_i32_0 : i32, i32, i32
  }
  func.func @transform_2(%arg0: i32, %arg1: i32, %arg2: memref<2xi32, #tpu.memory_space<smem>>) -> (i32, i32, i32) {
    %c0_i32 = arith.constant 0 : i32
    %c0_i32_0 = arith.constant 0 : i32
    return %arg0, %arg1, %c0_i32 : i32, i32, i32
  }
}

</mosaic_0001>

<llo_original>
// kernel: tpu_custom_call.1
$region0: #{tpu_custom_call.1}
  #allocation0 [shape = 'u32[]', space=smem, size = 0x4, offset = 0x4, fixed_abs, tag = 'smem constant byte address 0x4 - core index']
  #allocation1 [shape = 'u32[144,128]{1,0:T(1,128)}', space=vmem, size = 0x12000, scoped, tag = 'internal scratch']
  #allocation2 [shape = 's32[1]{0}', space=sflag, size = 0x4, scoped, tag = 'scoped memory for tpu_custom_call.1']
  #allocation3 [shape = 'u8[512]{0}', space=smem, size = 0x200, scoped, tag = 'prefetched SMEM operand 0']
  %s0 = inlined_call_operand.hbm [shape: s32[2], index: 0, kind: input, shape index: {}]
  %s1 = inlined_call_operand.hbm [shape: bf16[2,8,32], index: 1, kind: input, shape index: {}]
  %s2 = inlined_call_operand.hbm [shape: bf16[2,8,32], index: 2, kind: input, shape index: {}]
  %s3 = inlined_call_operand.hbm [shape: f32[2,8,8], index: 3, kind: output, shape index: {}]
  %s4 = sld [smem:[#allocation0]]
  $region57: #{tpu_custom_call.1} parent=0
    _
  %s6 = ssub.s32 1, %s4
  %s7 = scalar_select 0, %s6, %s4
  %9 = dma.hbm_to_smem %s0, 16, [#allocation3], [#allocation2]
  %10 = dma.done [#allocation2], 16
  %11 = sfence
  $region1: #{tpu_custom_call.1} parent=0
    #allocation4 [shape = 'u8[4096]{0}', space=vmem, size = 0x1000, scoped, tag = 'input window, operand 1']
    #allocation5 [shape = 's32[2]{0}', space=sflag, size = 0x8, scoped, tag = 'scoped memory for tpu_custom_call.1']
    #allocation6 [shape = 's32[2]{0}', space=sflag, size = 0x8, scoped, tag = 'scoped memory for tpu_custom_call.1']
    #allocation7 [shape = 'u8[4096]{0}', space=vmem, size = 0x1000, scoped, tag = 'input window, operand 2']
    #allocation8 [shape = 's32[2]{0}', space=sflag, size = 0x8, scoped, tag = 'scoped memory for tpu_custom_call.1']
    #allocation9 [shape = 'u8[8192]{0}', space=vmem, size = 0x2000, scoped, tag = 'output window, operand 0']
    %12 = vsyncpa [#allocation5], 0
    %s13 = scalar_lea.sflag [#allocation5], 1
    %14 = vsyncpa %s13, 0
    %15 = vsyncpa [#allocation8], 0
    %s16 = scalar_lea.sflag [#allocation8], 1
    %17 = vsyncpa %s16, 0
    %18 = vsyncpa [#allocation6], 0
    %s19 = scalar_lea.sflag [#allocation6], 1
    %20 = vsyncpa %s19, 0
    loop: start=0, step=1, limit=4
    $region2: #{tpu_custom_call.1} parent=1 // loop_pre_header
      _
    $region3: #{tpu_custom_call.1} parent=1 // loop_header
      %s22 = sphi 0, %s26
      %p23 = scmp.ge.s32.totalorder %s22, 4
      %s29 = sphi 0, %s41
      %s30 = sphi 0, %s37
      %s31 = sphi 0, %s29
      %s32 = sphi 0, %s30
      %s33 = sphi 0, %s31
      %s34 = sphi 0, %s32
      %s46 = sphi 0, %s48
      %s49 = sphi 0, %s46
      %s50 = sphi 0, %s49
      %s66 = sphi 0, %s50
      %s72 = sphi 0, %s74
      %s75 = sphi 0, %s72
      %s76 = sphi 0, %s75
      %s92 = sphi 0, %s76
      %s100 = sphi 0, %s102
      %s103 = sphi 0, %s100
      %s104 = sphi 0, %s103
      %s120 = sphi 0, %s104
    $region4: #{tpu_custom_call.1} parent=1 // loop_header_branch
      %25 = sbr.rel (%p23) target = $region8
    $region5: #{tpu_custom_call.1} parent=1 // loop_body
      %s27 = ssub.s32 %s22, 1
      %s28 = ssub.s32 %s22, 2
      %s35 = sadd.s32 1, %s30
      %p36 = scmp.ge.s32.totalorder %s35, 1
      %s37 = scalar_select %p36, 0, %s35
      %s38 = sadd.s32 1, %s29
      %s39 = scalar_select %p36, %s38, %s29
      %p40 = scmp.ge.s32.totalorder %s39, 2
      %s41 = scalar_select %p40, 0, %s39
      %s42 = ssub.s32 %s29, %s41
      %s43 = ssub.s32 %s30, %s37
      %s44 = sor.u32 %s42, %s43
      %p45 = scmp.eq.s32.totalorder %s44, 0
      %s47 = sadd.s32 %s46, 1
      %s48 = scalar_select %p45, %s46, %s47
      %p51 = pneg %p45
      %p52 = scmp.eq.s32.totalorder %s22, 1
      %p53 = por %p51, %p52
      %p54 = scmp.ne.s32.totalorder %s46, %s49
      %p55 = scmp.eq.s32.totalorder %s22, 0
      %p56 = por %p54, %p55
      %p57 = scmp.ne.s32.totalorder %s46, %s49
      %p58 = scmp.eq.s32.totalorder %s27, 1
      %p59 = por %p57, %p58
      %p60 = scmp.ne.s32.totalorder %s49, %s50
      %p61 = scmp.eq.s32.totalorder %s27, 0
      %p62 = por %p60, %p61
      %p63 = scmp.ne.s32.totalorder %s49, %s50
      %p64 = scmp.eq.s32.totalorder %s28, 1
      %p65 = por %p63, %p64
      %p67 = scmp.ne.s32.totalorder %s50, %s66
      %p68 = scmp.eq.s32.totalorder %s28, 0
      %p69 = por %p67, %p68
      %s70 = ssub.s32 %s29, %s41
      %p71 = scmp.eq.s32.totalorder %s70, 0
      %s73 = sadd.s32 %s72, 1
      %s74 = scalar_select %p71, %s72, %s73
      %p77 = pneg %p71
      %p78 = scmp.eq.s32.totalorder %s22, 1
      %p79 = por %p77, %p78
      %p80 = scmp.ne.s32.totalorder %s72, %s75
      %p81 = scmp.eq.s32.totalorder %s22, 0
      %p82 = por %p80, %p81
      %p83 = scmp.ne.s32.totalorder %s72, %s75
      %p84 = scmp.eq.s32.totalorder %s27, 1
      %p85 = por %p83, %p84
      %p86 = scmp.ne.s32.totalorder %s75, %s76
      %p87 = scmp.eq.s32.totalorder %s27, 0
      %p88 = por %p86, %p87
      %p89 = scmp.ne.s32.totalorder %s75, %s76
      %p90 = scmp.eq.s32.totalorder %s28, 1
      %p91 = por %p89, %p90
      %p93 = scmp.ne.s32.totalorder %s76, %s92
      %p94 = scmp.eq.s32.totalorder %s28, 0
      %p95 = por %p93, %p94
      %s96 = ssub.s32 %s29, %s41
      %s97 = ssub.s32 %s30, %s37
      %s98 = sor.u32 %s96, %s97
      %p99 = scmp.eq.s32.totalorder %s98, 0
      %s101 = sadd.s32 %s100, 1
      %s102 = scalar_select %p99, %s100, %s101
      %p105 = pneg %p99
      %p106 = scmp.eq.s32.totalorder %s22, 1
      %p107 = por %p105, %p106
      %p108 = scmp.ne.s32.totalorder %s100, %s103
      %p109 = scmp.eq.s32.totalorder %s22, 0
      %p110 = por %p108, %p109
      %p111 = scmp.ne.s32.totalorder %s100, %s103
      %p112 = scmp.eq.s32.totalorder %s27, 1
      %p113 = por %p111, %p112
      %p114 = scmp.ne.s32.totalorder %s103, %s104
      %p115 = scmp.eq.s32.totalorder %s27, 0
      %p116 = por %p114, %p115
      %p117 = scmp.ne.s32.totalorder %s103, %s104
      %p118 = scmp.eq.s32.totalorder %s28, 1
      %p119 = por %p117, %p118
      %p121 = scmp.ne.s32.totalorder %s104, %s120
      %p122 = scmp.eq.s32.totalorder %s28, 0
      %p123 = por %p121, %p122
      %p124 = scmp.le.s32.totalorder 1, %s22
      %p125 = scmp.lt.s32.totalorder %s22, 3
      %p126 = pnand %p124, %p125
      %p127 = pneg %p126
      // Predicated region
      $region9: #{tpu_custom_call.1} parent=5 // pred_check
        _
      $region10: #{tpu_custom_call.1} parent=5 // pred_check_branch
        %129 = sbr.rel (%p126) target = $region12
      $region11: #{tpu_custom_call.1} parent=5 // pred_region
        %s130 = ssub.s32 %s22, 1
      $region12: #{tpu_custom_call.1} parent=5 // pred_fallthru
        _
      %p131 = scmp.lt.s32.totalorder %s22, 2
      // Predicated region
      $region13: #{tpu_custom_call.1} parent=5 // pred_check
        %p132 = pneg %p131
      $region14: #{tpu_custom_call.1} parent=5 // pred_check_branch
        %134 = sbr.rel (%p132) target = $region16
      $region15: #{tpu_custom_call.1} parent=5 // pred_region
        // Predicated region
        $region17: #{tpu_custom_call.1} parent=15 // pred_check
          %p135 = pneg %p56
        $region18: #{tpu_custom_call.1} parent=15 // pred_check_branch
          %137 = sbr.rel (%p135) target = $region20
        $region19: #{tpu_custom_call.1} parent=15 // pred_region
          %s138 = sand.u32 %s46, 1
          %s139 = scalar_lea.sflag [#allocation5], %s138
          %s140 = sand.u32 %s46, 1
          %s141 = smul.addr %s140, 4
          %s142 = scalar_lea.vmem [#allocation4], %s141
          %s144 = ssub.s32 64, 64
          %145 = vsyncadd %s139, %s144
          %s146 = sadd.s32 %s30, %s29
          %s147 = smul.addr %s146, 64
          %s148 = scalar_lea.hbm %s1, %s147
          %s150 = sshll.u32 %s142, 4
          %s151 = int_to_ptr.vmem [resolvable:$true] %s150
          %153 = dma.hbm_to_vmem [thread:$0]  %s148, 64, %s151, %s139
        $region20: #{tpu_custom_call.1} parent=15 // pred_fallthru
          _
        // Predicated region
        $region21: #{tpu_custom_call.1} parent=15 // pred_check
          %p154 = pneg %p82
        $region22: #{tpu_custom_call.1} parent=15 // pred_check_branch
          %156 = sbr.rel (%p154) target = $region24
        $region23: #{tpu_custom_call.1} parent=15 // pred_region
          %s157 = sand.u32 %s72, 1
          %s158 = scalar_lea.sflag [#allocation8], %s157
          %s159 = sand.u32 %s72, 1
          %s160 = smul.addr %s159, 4
          %s161 = scalar_lea.vmem [#allocation7], %s160
          %s163 = ssub.s32 64, 64
          %164 = vsyncadd %s158, %s163
          %s165 = smul.addr %s29, 64
          %s166 = scalar_lea.hbm %s2, %s165
          %s168 = sshll.u32 %s161, 4
          %s169 = int_to_ptr.vmem [resolvable:$true] %s168
          %171 = dma.hbm_to_vmem [thread:$0]  %s166, 64, %s169, %s158
        $region24: #{tpu_custom_call.1} parent=15 // pred_fallthru
          _
      $region16: #{tpu_custom_call.1} parent=5 // pred_fallthru
        _
      %p172 = scmp.le.s32.totalorder 1, %s22
      %p173 = scmp.lt.s32.totalorder %s22, 3
      %p174 = pnand %p172, %p173
      %p175 = pneg %p174
      // Predicated region
      $region25: #{tpu_custom_call.1} parent=5 // pred_check
        _
      $region26: #{tpu_custom_call.1} parent=5 // pred_check_branch
        %177 = sbr.rel (%p174) target = $region28
      $region27: #{tpu_custom_call.1} parent=5 // pred_region
        %s178 = ssub.s32 %s22, 1
        %s179 = sand.u32 %s49, 1
        %s180 = scalar_lea.sflag [#allocation5], %s179
        %s181 = sand.u32 %s49, 1
        %s182 = smul.addr %s181, 4
        %s183 = scalar_lea.vmem [#allocation4], %s182
        // Predicated region
        $region29: #{tpu_custom_call.1} parent=27 // pred_check
          %p184 = pneg %p62
        $region30: #{tpu_custom_call.1} parent=27 // pred_check_branch
          %186 = sbr.rel (%p184) target = $region32
        $region31: #{tpu_custom_call.1} parent=27 // pred_region
          %187 = dma.done %s180, 64
        $region32: #{tpu_custom_call.1} parent=27 // pred_fallthru
          _
        %s188 = sand.u32 %s75, 1
        %s189 = scalar_lea.sflag [#allocation8], %s188
        %s190 = sand.u32 %s75, 1
        %s191 = smul.addr %s190, 4
        %s192 = scalar_lea.vmem [#allocation7], %s191
        // Predicated region
        $region33: #{tpu_custom_call.1} parent=27 // pred_check
          %p193 = pneg %p88
        $region34: #{tpu_custom_call.1} parent=27 // pred_check_branch
          %195 = sbr.rel (%p193) target = $region36
        $region35: #{tpu_custom_call.1} parent=27 // pred_region
          %196 = dma.done %s189, 64
        $region36: #{tpu_custom_call.1} parent=27 // pred_fallthru
          _
        %s197 = sand.u32 %s49, 1
        %s198 = scalar_lea.sflag [#allocation5], %s197
        %s199 = sand.u32 %s49, 1
        %s200 = smul.addr %s199, 4
        %s201 = scalar_lea.vmem [#allocation4], %s200
        %p202 = pneg %p62
        %p203 = pneg %p59
        %s204 = sand.u32 %s75, 1
        %s205 = scalar_lea.sflag [#allocation8], %s204
        %s206 = sand.u32 %s75, 1
        %s207 = smul.addr %s206, 4
        %s208 = scalar_lea.vmem [#allocation7], %s207
        %p209 = pneg %p88
        %p210 = pneg %p85
        %p211 = pneg %p116
        %p212 = pneg %p113
        %s213 = sand.u32 %s103, 1
        %s214 = scalar_lea.sflag [#allocation6], %s213
        %s215 = sand.u32 %s103, 1
        %s216 = smul.addr %s215, 8
        %s217 = scalar_lea.vmem [#allocation9], %s216
        %s219 = sld [smem:[#allocation3 + %s31]]
        %s220 = smul.u32 %s32, 8
        %p221 = scmp.ge.s32.totalorder %s220, %s219
        // Predicated region
        $region37: #{tpu_custom_call.1} parent=27 // pred_check
          %p222 = pneg %p221
        $region38: #{tpu_custom_call.1} parent=27 // pred_check_branch
          %224 = sbr.rel (%p222) target = $region40
        $region39: #{tpu_custom_call.1} parent=27 // pred_region
          %vm225 = vcmask 64512
          %226 = vst.msk [vmem:[%s217] sm:$0xff] %vm225, 0.0
        $region40: #{tpu_custom_call.1} parent=27 // pred_fallthru
          _
        %p227 = scmp.lt.s32.totalorder %s220, %s219
        // Predicated region
        $region41: #{tpu_custom_call.1} parent=27 // pred_check
          %p228 = pneg %p227
        $region42: #{tpu_custom_call.1} parent=27 // pred_check_branch
          %230 = sbr.rel (%p228) target = $region44
        $region43: #{tpu_custom_call.1} parent=27 // pred_region
          %v231 = vld [vmem:[%s183] sm:$0xf]
          %v232 = vld [vmem:[%s192] sm:$0xf]
          %vm233 = vcmask 261120
          %v235 = vsel %vm233, %v231, 0
          %v238 = vsel %vm233, %v232, 0
          %240 = vmatprep.subr.bf16.mxu0 0
          %241 = vmatpush1.bf16.xpose.msra.mxu0 %v238
          %242 = vmatprep.subr.bf16.mxu0 0
          %243 = vmatpush1.bf16.xpose.msra.mxu0 0
          %244 = vmatprep.subr.bf16.mxu0 0
          %245 = vmatpush1.bf16.xpose.msra.mxu0 0
          %246 = vmatprep.subr.bf16.mxu0 0
          %247 = vmatpush1.bf16.xpose.msra.mxu0 0
          %248 = vmatprep.subr.bf16.mxu0 0
          %249 = vmatpush1.bf16.xpose.msra.mxu0 0
          %250 = vmatprep.subr.bf16.mxu0 0
          %251 = vmatpush1.bf16.xpose.msra.mxu0 0
          %252 = vmatprep.subr.bf16.mxu0 0
          %253 = vmatpush1.bf16.xpose.msra.mxu0 0
          %254 = vmatprep.subr.bf16.mxu0 0
          %255 = vmatpush1.bf16.xpose.msra.mxu0 0
          %256 = vmatprep.subr.bf16.mxu0 0
          %257 = vmatpush1.bf16.xpose.msra.mxu0 0
          %258 = vmatprep.subr.bf16.mxu0 0
          %259 = vmatpush1.bf16.xpose.msra.mxu0 0
          %260 = vmatprep.subr.bf16.mxu0 0
          %261 = vmatpush1.bf16.xpose.msra.mxu0 0
          %262 = vmatprep.subr.bf16.mxu0 0
          %263 = vmatpush1.bf16.xpose.msra.mxu0 0
          %264 = vmatprep.subr.bf16.mxu0 0
          %265 = vmatpush1.bf16.xpose.msra.mxu0 0
          %266 = vmatprep.subr.bf16.mxu0 0
          %267 = vmatpush1.bf16.xpose.msra.mxu0 0
          %268 = vmatprep.subr.bf16.mxu0 0
          %269 = vmatpush1.bf16.xpose.msra.mxu0 0
          %270 = vmatprep.subr.bf16.mxu0 0
          %271 = vmatpush1.bf16.xpose.msra.mxu0 0
          %272 = vmatprep.mubr.bf16.mxu0 0
          %273 = vmatmul.mubr.bf16.gmra.mrb[0].mxu0 %v235
          %v274 = vpop.f32.mrb[0].mxu0
          %v275 = vadd.f32 0.0, %v274
          %v276 = vpop.f32.mrb[0].mxu0
          %v277 = vpop.f32.mrb[0].mxu0
          %v278 = vpop.f32.mrb[0].mxu0
          %279 = vdwg.mxu0
          %vm280 = vcmp.gt.f32.partialorder %v275, 0.7
          %v281 = vsel %vm280, %v275, 0.0
          %v282 = vlaneseq
          %v283 = vshrl.u32 %v282, 7
          %v284 = vstv %s220
          %v285 = vadd.s32 %v284, %v283
          %v286 = vstv %s219
          %vm287 = vcmp.lt.s32.totalorder %v285, %v286
          %v288 = vlaneseq
          %v289 = vand.u32 %v288, 127
          %vm290 = vcmp.lt.s32.totalorder %v289, %v286
          %v291 = vmul.f32 %v281, 1.442695
          %v292 = vpow.pop %v291
          %v293 = vsel %vm290, 1, 0
          %vm294 = vcmp.eq.s32.totalorder %v293, 1
          %v295 = vsel %vm294, %v292, 0.0
          %vm296 = vcmask 64512
          %v297 = vsel %vm296, %v295, 0.0
          %298 = vadd.xlane.f32.xlu0 %v297
          %v299 = vpop.xlane.xlu0 %298
          %v300 = vrcp.pop %v299
          %v301 = vmul.f32 %v295, %v300
          %v302 = vsel %vm287, 1, 0
          %vm303 = vcmp.eq.s32.totalorder %v302, 1
          %v304 = vsel %vm303, %v301, 0.0
          %305 = vst.msk [vmem:[%s217] sm:$0xff] %vm296, %v304
        $region44: #{tpu_custom_call.1} parent=27 // pred_fallthru
          _
        %s306 = sand.u32 %s103, 1
        %s307 = scalar_lea.sflag [#allocation6], %s306
        %s308 = sand.u32 %s103, 1
        %s309 = smul.addr %s308, 8
        %s310 = scalar_lea.vmem [#allocation9], %s309
        // Predicated region
        $region45: #{tpu_custom_call.1} parent=27 // pred_check
          %p311 = pneg %p113
        $region46: #{tpu_custom_call.1} parent=27 // pred_check_branch
          %313 = sbr.rel (%p311) target = $region48
        $region47: #{tpu_custom_call.1} parent=27 // pred_region
          %s315 = ssub.s32 128, 128
          %316 = vsyncadd %s307, %s315
          %s317 = sadd.s32 %s32, %s31
          %s318 = smul.addr %s317, 128
          %s319 = scalar_lea.hbm %s3, %s318
          %s321 = sshll.u32 %s310, 4
          %s322 = int_to_ptr.vmem [resolvable:$true] %s321
          %324 = dma.vmem_to_hbm [thread:$0]  %s322, 128, %s319, %s307
        $region48: #{tpu_custom_call.1} parent=27 // pred_fallthru
          _
      $region28: #{tpu_custom_call.1} parent=5 // pred_fallthru
        _
      %p325 = scmp.le.s32.totalorder 2, %s22
      // Predicated region
      $region49: #{tpu_custom_call.1} parent=5 // pred_check
        %p326 = pneg %p325
      $region50: #{tpu_custom_call.1} parent=5 // pred_check_branch
        %328 = sbr.rel (%p326) target = $region52
      $region51: #{tpu_custom_call.1} parent=5 // pred_region
        %s329 = ssub.s32 %s22, 2
        // Predicated region
        $region53: #{tpu_custom_call.1} parent=51 // pred_check
          %p330 = pneg %p119
        $region54: #{tpu_custom_call.1} parent=51 // pred_check_branch
          %332 = sbr.rel (%p330) target = $region56
        $region55: #{tpu_custom_call.1} parent=51 // pred_region
          %s333 = sand.u32 %s104, 1
          %s334 = scalar_lea.sflag [#allocation6], %s333
          %s335 = sand.u32 %s104, 1
          %s336 = smul.addr %s335, 8
          %s337 = scalar_lea.vmem [#allocation9], %s336
          %338 = dma.done %s334, 128
        $region56: #{tpu_custom_call.1} parent=51 // pred_fallthru
          _
      $region52: #{tpu_custom_call.1} parent=5 // pred_fallthru
        _
    $region6: #{tpu_custom_call.1} parent=1 // loop_footer
      %s26 = sadd.s32 1, %s22
    $region7: #{tpu_custom_call.1} parent=1 // loop_footer_branch
      %21 = sbr.rel target = $region3
    $region8: #{tpu_custom_call.1} parent=1 // loop_exit
      _
    %339 = vsyncpa [#allocation5], 1
    %s340 = scalar_lea.sflag [#allocation5], 1
    %341 = vsyncpa %s340, 1
    %342 = vsyncpa [#allocation8], 1
    %s343 = scalar_lea.sflag [#allocation8], 1
    %344 = vsyncpa %s343, 1
    %345 = vsyncpa [#allocation6], 1
    %s346 = scalar_lea.sflag [#allocation6], 1
    %347 = vsyncpa %s346, 1

</llo_original>
